<compile_context>
chip_gen: v7x
topology: tpu7x:2x2x1
jax: 0.10.0
libtpu: 0.0.40
codegen_flags: <defaults>
</compile_context>

<pallas_src>
import functools

import jax
import jax.numpy as jnp
from jax.experimental import pallas as pl
from jax.experimental.pallas import tpu as pltpu


def _round_up(x, m):
    return ((x + m - 1) // m) * m


def _cdiv(a, b):
    return -(-a // b)


def _build_interp_terms(boxes, H, W, pool_h, pool_w, sampling, spatial_scale):
    """Bilinear sample terms per ROI: (hw_idx, weight), each (R, PHW, 4*g*g).

    Matches torchvision roi_align with aligned=True (0.5 offset, -1<=y<=H
    validity window, edge clamping, 1/count averaging). Out-of-range samples
    get weight 0 (index stays clamped / in range).
    """
    if sampling <= 0:
        # TODO(synk): adaptive sampling_ratio=-1 needs a per-ROI data-dependent
        # sample grid (ceil(roi_h/pool_h)); only fixed sampling_ratio supported.
        raise NotImplementedError("adaptive sampling (-1) not supported")

    offset = 0.5
    start_w = boxes[:, 0] * spatial_scale - offset
    start_h = boxes[:, 1] * spatial_scale - offset
    end_w = boxes[:, 2] * spatial_scale - offset
    end_h = boxes[:, 3] * spatial_scale - offset
    bin_w = (end_w - start_w) / pool_w
    bin_h = (end_h - start_h) / pool_h

    gh = gw = int(sampling)
    count = float(gh * gw)

    iy = (jnp.arange(gh, dtype=jnp.float32) + 0.5) / gh
    ix = (jnp.arange(gw, dtype=jnp.float32) + 0.5) / gw
    phs = jnp.arange(pool_h, dtype=jnp.float32)
    pws = jnp.arange(pool_w, dtype=jnp.float32)

    # y: (R, pool_h, gh), x: (R, pool_w, gw)
    y = start_h[:, None, None] + (phs[None, :, None] + iy[None, None, :]) * bin_h[:, None, None]
    x = start_w[:, None, None] + (pws[None, :, None] + ix[None, None, :]) * bin_w[:, None, None]

    yb = y[:, :, None, :, None]      # (R, ph, 1, gh, 1)
    xb = x[:, None, :, None, :]      # (R, 1, pw, 1, gw)

    valid = ((yb >= -1.0) & (yb <= float(H)) &
             (xb >= -1.0) & (xb <= float(W)))

    yc = jnp.clip(yb, 0.0)
    xc = jnp.clip(xb, 0.0)
    y_low = jnp.minimum(jnp.floor(yc), H - 1).astype(jnp.int32)
    x_low = jnp.minimum(jnp.floor(xc), W - 1).astype(jnp.int32)
    y_high = jnp.minimum(y_low + 1, H - 1)
    x_high = jnp.minimum(x_low + 1, W - 1)
    y_eff = jnp.where(y_low >= H - 1, y_low.astype(jnp.float32), yc)
    x_eff = jnp.where(x_low >= W - 1, x_low.astype(jnp.float32), xc)

    ly = y_eff - y_low.astype(jnp.float32)
    lx = x_eff - x_low.astype(jnp.float32)
    hy = 1.0 - ly
    hx = 1.0 - lx

    scale = valid.astype(jnp.float32) * (1.0 / count)   # (R, ph, pw, gh, gw)
    w1 = hy * hx * scale
    w2 = hy * lx * scale
    w3 = ly * hx * scale
    w4 = ly * lx * scale

    i11 = y_low * W + x_low
    i12 = y_low * W + x_high
    i21 = y_high * W + x_low
    i22 = y_high * W + x_high

    weights = jnp.stack([w1, w2, w3, w4], axis=-1)       # (R, ph, pw, gh, gw, 4)
    hw_idx = jnp.stack(
        [jnp.broadcast_to(i, w1.shape) for i in (i11, i12, i21, i22)], axis=-1)

    R = boxes.shape[0]
    PHW = pool_h * pool_w
    G = 4 * gh * gw
    return hw_idx.reshape(R, PHW, G), weights.reshape(R, PHW, G)


def _roi_align_kernel(num_k, bidx_ref, ks_ref, kc_ref, m_ref, feat_ref,
                      out_ref, *scratch):
    # m_ref:    (TM, HW_TILE)    bf16 interpolation-weight slab for one chunk
    # feat_ref: (1, HW_TILE, C)  bf16 feature K-slab of the chunk's batch
    # out_ref:  (TM, C)
    del bidx_ref, ks_ref  # consumed by the index_maps only

    if num_k == 1:
        # Single-K fast path: no accumulator scratch / extra VMEM pass.
        out_ref[...] = jnp.dot(
            m_ref[...], feat_ref[0],
            preferred_element_type=jnp.float32).astype(out_ref.dtype)
        return

    acc_ref, = scratch
    c = pl.program_id(0)
    k = pl.program_id(1)
    kc = kc_ref[c]                 # number of valid (nonzero) K slabs, >= 1

    @pl.when(k == 0)
    def _():
        # k==0 always maps to the chunk's first valid slab: direct assign
        # (no separate zero-init pass over the f32 accumulator).
        acc_ref[...] = jnp.dot(m_ref[...], feat_ref[0],
                               preferred_element_type=jnp.float32)

    @pl.when(jnp.logical_and(k > 0, k < kc))
    def _():
        acc_ref[...] += jnp.dot(m_ref[...], feat_ref[0],
                                preferred_element_type=jnp.float32)

    @pl.when(k == num_k - 1)
    def _():
        out_ref[...] = acc_ref[...].astype(out_ref.dtype)


@functools.partial(
    jax.jit,
    static_argnames=("num_chunks", "num_k", "tm", "hw_tile", "c_dim",
                     "out_dtype", "vmem_limit"))
def _roi_align_pallas(chunk_bidx, k_start, k_cnt, m_flat, feat_pad, *,
                      num_chunks, num_k, tm, hw_tile, c_dim, out_dtype,
                      vmem_limit):
    # K-skip: clamp k into the chunk's valid window. A repeated block index
    # means Pallas elides the DMA, so skipped slabs cost neither M nor feature
    # bytes; the kernel guards the dot with pl.when on validity.
    def m_map(c, k, bidx, ks, kc):
        return (c, ks[c] + jnp.minimum(k, kc[c] - 1))

    def f_map(c, k, bidx, ks, kc):
        return (bidx[c], ks[c] + jnp.minimum(k, kc[c] - 1), 0)

    def o_map(c, k, bidx, ks, kc):
        return (c, 0)

    scratch = [] if num_k == 1 else [pltpu.VMEM((tm, c_dim), jnp.float32)]
    grid_spec = pltpu.PrefetchScalarGridSpec(
        num_scalar_prefetch=3,
        grid=(num_chunks, num_k),
        in_specs=[
            pl.BlockSpec((tm, hw_tile), m_map),
            pl.BlockSpec((1, hw_tile, c_dim), f_map),
        ],
        out_specs=pl.BlockSpec((tm, c_dim), o_map),
        scratch_shapes=scratch,
    )
    return pl.pallas_call(
        functools.partial(_roi_align_kernel, num_k),
        out_shape=jax.ShapeDtypeStruct((num_chunks * tm, c_dim), out_dtype),
        grid_spec=grid_spec,
        compiler_params=pltpu.CompilerParams(
            dimension_semantics=("parallel", "arbitrary"),
            vmem_limit_bytes=vmem_limit),
    )(chunk_bidx, k_start, k_cnt, m_flat, feat_pad)


def roi_align_batch(feat, roibatches, stride, pool_h, pool_w, sampling):
    """Forward of ROIAlignBatch. feat is NCHW (or a 1-entry dict of NCHW)."""
    if isinstance(feat, dict):
        if len(feat) > 1:
            raise ValueError("Roi Align batch only support one feature")
        for val in feat.values():
            feat = val

    N, C, H, W = feat.shape
    out_dtype = jnp.dtype(feat.dtype)
    spatial_scale = 1.0 / float(stride)
    PHW = pool_h * pool_w
    HW = H * W

    roi_num_per_batch = [int(r.shape[0]) for r in roibatches]
    R = sum(roi_num_per_batch)
    if R == 0:
        return tuple(jnp.zeros((0, C, pool_h, pool_w), out_dtype)
                     for _ in roi_num_per_batch)

    boxes = jnp.concatenate(
        [jnp.asarray(r, jnp.float32)[:, :4] for r in roibatches], axis=0)

    # ---- row tiling: TM >= 256 (fills the 256-wide MXU on v6e/v7x, amortizes
    # feature DMA), aligned to 16 sublanes since M is packed bf16 ----
    rpc = max(1, _cdiv(256, PHW))
    while (rpc * PHW) % 16 != 0:
        rpc += 1
    TM = rpc * PHW

    # ---- K tiling that minimizes HW padding, with a per-core VMEM budget ----
    out_bytes = out_dtype.itemsize
    max_tile = 2048
    while True:
        NUM_K = _cdiv(HW, max_tile)
        HW_TILE = _round_up(_cdiv(HW, NUM_K), 128)
        est = (2 * TM * HW_TILE * 2        # M tiles (double-buffered bf16)
               + 2 * HW_TILE * C * 2       # feature tiles (double-buffered bf16)
               + TM * C * 4                # f32 accumulator
               + 2 * TM * C * out_bytes)   # output tiles (double-buffered)
        if est <= (40 << 20) or max_tile <= 256:   # stay inside v7x 64 MiB/TC
            break
        max_tile //= 2
    HW_PAD = NUM_K * HW_TILE
    vmem_limit = int(min(max(est + (4 << 20), 32 << 20), 48 << 20))

    # ---- per-batch padded ROI layout: chunks never cross a batch boundary ----
    dest, chunk_bidx, batch_row_start = [], [], []
    pad_off = 0
    for b, n in enumerate(roi_num_per_batch):
        batch_row_start.append(pad_off)
        dest.extend(range(pad_off, pad_off + n))
        n_pad = _round_up(n, rpc)
        chunk_bidx.extend([b] * (n_pad // rpc))
        pad_off += n_pad
    if (pad_off // rpc) % 2 == 1:
        # Even chunk count keeps both v7x TensorCores busy on the parallel axis.
        chunk_bidx.append(0)
        pad_off += rpc
    R_pad = pad_off
    num_chunks = R_pad // rpc

    # ---- bilinear sample terms + per-chunk valid K window ----
    hw_idx, wts = _build_interp_terms(boxes, H, W, pool_h, pool_w,
                                      sampling, spatial_scale)
    dest_arr = jnp.asarray(dest, jnp.int32)                      # (R,)
    chunk_of_roi = dest_arr // rpc

    hw_flat = hw_idx.reshape(R, -1)
    k_of_min = (hw_flat.min(axis=1) // HW_TILE).astype(jnp.int32)
    k_of_max = (hw_flat.max(axis=1) // HW_TILE).astype(jnp.int32)
    k_lo = jnp.full((num_chunks,), NUM_K - 1, jnp.int32).at[chunk_of_roi].min(k_of_min)
    k_hi = jnp.zeros((num_chunks,), jnp.int32).at[chunk_of_roi].max(k_of_max)
    k_cnt = jnp.maximum(k_hi - k_lo + 1, 1)

    # ---- sparse interpolation matrix, flat (R_pad*PHW, HW_PAD), bf16 ----
    # TODO(synk): for very large HW, build M tiles in-kernel from the compact
    # (hw_idx, wts) arrays to avoid this dense host-side scatter entirely.
    row = (dest_arr[:, None, None] * PHW
           + jnp.arange(PHW, dtype=jnp.int32)[None, :, None])     # (R, PHW, 1)
    M_flat = jnp.zeros((R_pad * PHW, HW_PAD), jnp.float32)
    M_flat = M_flat.at[row, hw_idx].add(wts).astype(jnp.bfloat16)

    # ---- features: NCHW -> (N, HW_PAD, C), channels-last, bf16, no C padding
    feat_flat = jnp.transpose(feat, (0, 2, 3, 1)).reshape(N, HW, C)
    feat_flat = feat_flat.astype(jnp.bfloat16)
    if HW_PAD > HW:
        feat_flat = jnp.pad(feat_flat, ((0, 0), (0, HW_PAD - HW), (0, 0)))

    out = _roi_align_pallas(
        jnp.asarray(chunk_bidx, jnp.int32), k_lo, k_cnt, M_flat, feat_flat,
        num_chunks=num_chunks, num_k=NUM_K, tm=TM, hw_tile=HW_TILE,
        c_dim=C, out_dtype=out_dtype, vmem_limit=vmem_limit)
    out = out.reshape(R_pad, PHW, C)

    # split back per batch (torch.split equivalent), drop padding, to NCHW
    splits = []
    for b, n in enumerate(roi_num_per_batch):
        s = batch_row_start[b]
        o = out[s:s + n].reshape(n, pool_h, pool_w, C)
        splits.append(jnp.transpose(o, (0, 3, 1, 2)))
    return tuple(splits)


def _reference(feat, roibatches, stride, pool_h, pool_w, sampling):
    """Pure-JAX f32 reference (same interpolation math, dense einsum)."""
    N, C, H, W = feat.shape
    HW = H * W
    PHW = pool_h * pool_w
    boxes = jnp.concatenate(
        [jnp.asarray(r, jnp.float32)[:, :4] for r in roibatches], axis=0)
    batch_idx = jnp.concatenate(
        [jnp.full((int(r.shape[0]),), b, dtype=jnp.int32)
         for b, r in enumerate(roibatches)], axis=0)
    hw_idx, wts = _build_interp_terms(boxes, H, W, pool_h, pool_w,
                                      sampling, 1.0 / stride)
    R = int(boxes.shape[0])
    r_idx = jnp.arange(R, dtype=jnp.int32)[:, None, None]
    p_idx = jnp.arange(PHW, dtype=jnp.int32)[None, :, None]
    M = jnp.zeros((R, PHW, HW), jnp.float32).at[r_idx, p_idx, hw_idx].add(wts)
    feat_flat = jnp.transpose(feat, (0, 2, 3, 1)).reshape(N, HW, C)
    out = jnp.einsum("rpq,rqc->rpc", M, feat_flat[batch_idx])
    out = out.reshape(R, pool_h, pool_w, C)
    return jnp.transpose(out, (0, 3, 1, 2))


def _check(feat, roibatches, stride, pool_h, pool_w, sampling):
    outs = roi_align_batch(feat, roibatches, stride, pool_h, pool_w, sampling)
    outs = jax.block_until_ready(outs)
    for o, r in zip(outs, roibatches):
        assert o.shape == (int(r.shape[0]), feat.shape[1], pool_h, pool_w)
    ref = _reference(feat, roibatches, stride, pool_h, pool_w, sampling)
    got = jnp.concatenate(outs, axis=0)
    # bf16 operands (M + feat) with f32 accumulation vs. f32 reference.
    err = jnp.max(jnp.abs(got - ref))
    assert jnp.allclose(got, ref, atol=3e-2, rtol=3e-2), f"max err {err}"


if __name__ == "__main__":
    key = jax.random.PRNGKey(0)
    pool_h = pool_w = 4
    sampling = 2                   # fixed sampling ratio (adaptive -1 is a TODO)

    # --- Test 1: small map, single K slab (NUM_K == 1 fast path) ---
    N, C, H, W = 2, 4, 16, 16
    stride = 4                      # feature stride -> image is 64x64
    feat = jax.random.normal(key, (N, C, H, W), dtype=jnp.float32)
    rois_b0 = jnp.array([[4.0, 4.0, 40.0, 40.0],
                         [10.0, 8.0, 50.0, 30.0],
                         [0.0, 0.0, 63.0, 63.0]], dtype=jnp.float32)
    rois_b1 = jnp.array([[8.0, 16.0, 32.0, 60.0],
                         [20.0, 5.0, 44.0, 28.0]], dtype=jnp.float32)
    _check(feat, [rois_b0, rois_b1], stride, pool_h, pool_w, sampling)

    # --- Test 2: larger map (HW=4096 -> NUM_K=2), exercises the K-tiled
    # accumulator, zero-slab skipping and nonzero k_start windows ---
    N2, C2, H2, W2 = 2, 8, 64, 64
    stride2 = 2                     # image is 128x128
    feat2 = jax.random.normal(jax.random.PRNGKey(1), (N2, C2, H2, W2),
                              dtype=jnp.float32)
    rois2_b0 = jnp.array([[4.0, 4.0, 40.0, 40.0],
                          [0.0, 0.0, 127.0, 127.0],
                          [10.0, 80.0, 50.0, 120.0]], dtype=jnp.float32)
    rois2_b1 = jnp.array([[8.0, 70.0, 60.0, 120.0],
                          [20.0, 66.0, 100.0, 126.0]], dtype=jnp.float32)
    _check(feat2, [rois2_b0, rois2_b1], stride2, pool_h, pool_w, sampling)

    print("KERNEL_OK")
</pallas_src>

<mosaic_0001>
module attributes {stable_mosaic.version = 11 : i64} {
  func.func @_roi_align_kernel(%arg0: i32, %arg1: i32, %arg2: memref<2xi32, #tpu.memory_space<smem>>, %arg3: memref<2xi32, #tpu.memory_space<smem>>, %arg4: memref<2xi32, #tpu.memory_space<smem>>, %arg5: memref<256x256xbf16, #tpu.memory_space<vmem>>, %arg6: memref<1x256x4xbf16, #tpu.memory_space<vmem>>, %arg7: memref<256x4xf32, #tpu.memory_space<vmem>>) attributes {dimension_semantics = [#tpu.dimension_semantics<parallel>, #tpu.dimension_semantics<arbitrary>], iteration_bounds = array<i64: 2, 1>, scalar_prefetch = 3 : i64, scratch_operands = 0 : i64, tpu.core_type = #tpu.core_type<tc>, window_params = [{transform_indices = @transform_0, window_bounds = array<i64: 256, 256>}, {transform_indices = @transform_1, window_bounds = array<i64: 1, 256, 4>}, {transform_indices = @transform_2, window_bounds = array<i64: 256, 4>}]} {
    %c0 = arith.constant 0 : index
    %c0_0 = arith.constant 0 : index
    %0 = vector.load %arg5[%c0, %c0_0] : memref<256x256xbf16, #tpu.memory_space<vmem>>, vector<256x256xbf16>
    %c0_1 = arith.constant 0 : index
    %c0_2 = arith.constant 0 : index
    %c0_3 = arith.constant 0 : index
    %1 = vector.load %arg6[%c0_1, %c0_2, %c0_3] : memref<1x256x4xbf16, #tpu.memory_space<vmem>>, vector<1x256x4xbf16>
    %2 = vector.shape_cast %1 : vector<1x256x4xbf16> to vector<256x4xbf16>
    %cst = arith.constant dense<0.000000e+00> : vector<256x4xf32>
    %3 = tpu.matmul %0, %2, %cst {dimension_numbers = #tpu.dot_dimension_numbers<[1], [0], [0], [1], [0, 0, 1, 1], [], []>} : vector<256x256xbf16>, vector<256x4xbf16>, vector<256x4xf32> -> vector<256x4xf32>
    %c0_4 = arith.constant 0 : index
    %c0_5 = arith.constant 0 : index
    %4 = vector.load %arg7[%c0_4, %c0_5] : memref<256x4xf32, #tpu.memory_space<vmem>>, vector<256x4xf32>
    tpu.vector_store %arg7[%c0_4, %c0_5], %3 {strides = array<i32>} : memref<256x4xf32, #tpu.memory_space<vmem>>, vector<256x4xf32>,
    return
  }
  func.func @transform_0(%arg0: i32, %arg1: i32, %arg2: memref<2xi32, #tpu.memory_space<smem>>, %arg3: memref<2xi32, #tpu.memory_space<smem>>, %arg4: memref<2xi32, #tpu.memory_space<smem>>) -> (i32, i32) {
    %0 = arith.index_cast %arg0 : i32 to index
    %1 = memref.load %arg3[%0] : memref<2xi32, #tpu.memory_space<smem>>
    %2 = arith.index_cast %arg0 : i32 to index
    %3 = memref.load %arg4[%2] : memref<2xi32, #tpu.memory_space<smem>>
    %c1_i32 = arith.constant 1 : i32
    %4 = arith.subi %3, %c1_i32 : i32
    %5 = arith.minsi %arg1, %4 : i32
    %6 = arith.addi %1, %5 : i32
    %c0_i32 = arith.constant 0 : i32
    return %arg0, %6 : i32, i32
  }
  func.func @transform_1(%arg0: i32, %arg1: i32, %arg2: memref<2xi32, #tpu.memory_space<smem>>, %arg3: memref<2xi32, #tpu.memory_space<smem>>, %arg4: memref<2xi32, #tpu.memory_space<smem>>) -> (i32, i32, i32) {
    %0 = arith.index_cast %arg0 : i32 to index
    %1 = memref.load %arg2[%0] : memref<2xi32, #tpu.memory_space<smem>>
    %2 = arith.index_cast %arg0 : i32 to index
    %3 = memref.load %arg3[%2] : memref<2xi32, #tpu.memory_space<smem>>
    %4 = arith.index_cast %arg0 : i32 to index
    %5 = memref.load %arg4[%4] : memref<2xi32, #tpu.memory_space<smem>>
    %c1_i32 = arith.constant 1 : i32
    %6 = arith.subi %5, %c1_i32 : i32
    %7 = arith.minsi %arg1, %6 : i32
    %8 = arith.addi %3, %7 : i32
    %c0_i32 = arith.constant 0 : i32
    %c0_i32_0 = arith.constant 0 : i32
    return %1, %8, %c0_i32 : i32, i32, i32
  }
  func.func @transform_2(%arg0: i32, %arg1: i32, %arg2: memref<2xi32, #tpu.memory_space<smem>>, %arg3: memref<2xi32, #tpu.memory_space<smem>>, %arg4: memref<2xi32, #tpu.memory_space<smem>>) -> (i32, i32) {
    %c0_i32 = arith.constant 0 : i32
    %c0_i32_0 = arith.constant 0 : i32
    return %arg0, %c0_i32 : i32, i32
  }
}

</mosaic_0001>

<llo_original>
// kernel: _roi_align_pallas.1
$region0: #{_roi_align_pallas.1}
  #allocation0 [shape = 'u32[]', space=smem, size = 0x4, offset = 0x4, fixed_abs, tag = 'smem constant byte address 0x4 - core index']
  #allocation1 [shape = 'u32[144,128]{1,0:T(1,128)}', space=vmem, size = 0x12000, scoped, tag = 'internal scratch']
  #allocation2 [shape = 's32[1]{0}', space=sflag, size = 0x4, scoped, tag = 'scoped memory for _roi_align_pallas.1']
  #allocation3 [shape = 'u8[512]{0}', space=smem, size = 0x200, scoped, tag = 'prefetched SMEM operand 0']
  #allocation4 [shape = 'u8[512]{0}', space=smem, size = 0x200, scoped, tag = 'prefetched SMEM operand 1']
  #allocation5 [shape = 'u8[512]{0}', space=smem, size = 0x200, scoped, tag = 'prefetched SMEM operand 2']
  %s0 = inlined_call_operand.vmem [shape: s32[2], index: 0, kind: input, shape index: {}]
  %s1 = inlined_call_operand.vmem [shape: s32[2], index: 1, kind: input, shape index: {}]
  %s2 = inlined_call_operand.vmem [shape: s32[2], index: 2, kind: input, shape index: {}]
  %s3 = inlined_call_operand.hbm [shape: bf16[512,256], index: 3, kind: input, shape index: {}]
  %s4 = inlined_call_operand.vmem [shape: bf16[2,256,4], index: 4, kind: input, shape index: {}]
  %s5 = inlined_call_operand.vmem [shape: f32[512,4], index: 5, kind: output, shape index: {}]
  %s6 = sld [smem:[#allocation0]]
  $region45: #{_roi_align_pallas.1} parent=0
    _
  %s8 = ssub.s32 1, %s6
  %s9 = scalar_select 0, %s8, %s6
  %s10 = sshll.u32 %s0, 4
  %s11 = int_to_ptr.vmem [resolvable:$true] %s10
  %13 = dma.vmem_to_smem %s11, 16, [#allocation3], [#allocation2]
  %s14 = sshll.u32 %s1, 4
  %s15 = int_to_ptr.vmem [resolvable:$true] %s14
  %17 = dma.vmem_to_smem %s15, 16, [#allocation4], [#allocation2]
  %s18 = sshll.u32 %s2, 4
  %s19 = int_to_ptr.vmem [resolvable:$true] %s18
  %21 = dma.vmem_to_smem %s19, 16, [#allocation5], [#allocation2]
  %22 = dma.done [#allocation2], 48
  %23 = sfence
  $region1: #{_roi_align_pallas.1} parent=0
    #allocation6 [shape = 'u8[262144]{0}', space=vmem, size = 0x40000, scoped, tag = 'input window, operand 3']
    #allocation7 [shape = 's32[2]{0}', space=sflag, size = 0x8, scoped, tag = 'scoped memory for _roi_align_pallas.1']
    %24 = vsyncpa [#allocation7], 0
    %s25 = scalar_lea.sflag [#allocation7], 1
    %26 = vsyncpa %s25, 0
    loop: start=0, step=1, limit=4
    $region2: #{_roi_align_pallas.1} parent=1 // loop_pre_header
      _
    $region3: #{_roi_align_pallas.1} parent=1 // loop_header
      %s28 = sphi 0, %s32
      %p29 = scmp.ge.s32.totalorder %s28, 4
      %s35 = sphi 0, %s47
      %s36 = sphi 0, %s43
      %s37 = sphi 0, %s35
      %s38 = sphi 0, %s36
      %s39 = sphi 0, %s37
      %s40 = sphi 0, %s38
      %s64 = sphi 0, %s66
      %s67 = sphi 0, %s64
      %s68 = sphi 0, %s67
      %s84 = sphi 0, %s68
      %s106 = sphi 0, %s108
      %s109 = sphi 0, %s106
      %s110 = sphi 0, %s109
      %s126 = sphi 0, %s110
      %s132 = sphi 0, %s134
      %s135 = sphi 0, %s132
      %s136 = sphi 0, %s135
      %s152 = sphi 0, %s136
    $region4: #{_roi_align_pallas.1} parent=1 // loop_header_branch
      %31 = sbr.rel (%p29) target = $region8
    $region5: #{_roi_align_pallas.1} parent=1 // loop_body
      %s33 = ssub.s32 %s28, 1
      %s34 = ssub.s32 %s28, 2
      %s41 = sadd.s32 1, %s36
      %p42 = scmp.ge.s32.totalorder %s41, 1
      %s43 = scalar_select %p42, 0, %s41
      %s44 = sadd.s32 1, %s35
      %s45 = scalar_select %p42, %s44, %s35
      %p46 = scmp.ge.s32.totalorder %s45, 2
      %s47 = scalar_select %p46, 0, %s45
      %s48 = sld [smem:[#allocation4 + %s35]]
      %s49 = sld [smem:[#allocation5 + %s35]]
      %s50 = ssub.s32 %s49, 1
      %p51 = scmp.lt.s32.totalorder %s36, %s50
      %s52 = scalar_select %p51, %s36, %s50
      %s53 = sadd.s32 %s48, %s52
      %s54 = sld [smem:[#allocation4 + %s47]]
      %s55 = sld [smem:[#allocation5 + %s47]]
      %s56 = ssub.s32 %s55, 1
      %p57 = scmp.lt.s32.totalorder %s43, %s56
      %s58 = scalar_select %p57, %s43, %s56
      %s59 = sadd.s32 %s54, %s58
      %s60 = ssub.s32 %s35, %s47
      %s61 = ssub.s32 %s53, %s59
      %s62 = sor.u32 %s60, %s61
      %p63 = scmp.eq.s32.totalorder %s62, 0
      %s65 = sadd.s32 %s64, 1
      %s66 = scalar_select %p63, %s64, %s65
      %p69 = pneg %p63
      %p70 = scmp.eq.s32.totalorder %s28, 1
      %p71 = por %p69, %p70
      %p72 = scmp.ne.s32.totalorder %s64, %s67
      %p73 = scmp.eq.s32.totalorder %s28, 0
      %p74 = por %p72, %p73
      %p75 = scmp.ne.s32.totalorder %s64, %s67
      %p76 = scmp.eq.s32.totalorder %s33, 1
      %p77 = por %p75, %p76
      %p78 = scmp.ne.s32.totalorder %s67, %s68
      %p79 = scmp.eq.s32.totalorder %s33, 0
      %p80 = por %p78, %p79
      %p81 = scmp.ne.s32.totalorder %s67, %s68
      %p82 = scmp.eq.s32.totalorder %s34, 1
      %p83 = por %p81, %p82
      %p85 = scmp.ne.s32.totalorder %s68, %s84
      %p86 = scmp.eq.s32.totalorder %s34, 0
      %p87 = por %p85, %p86
      %s88 = sld [smem:[#allocation3 + %s35]]
      %s89 = sld [smem:[#allocation4 + %s35]]
      %s90 = sld [smem:[#allocation5 + %s35]]
      %s91 = ssub.s32 %s90, 1
      %p92 = scmp.lt.s32.totalorder %s36, %s91
      %s93 = scalar_select %p92, %s36, %s91
      %s94 = sadd.s32 %s89, %s93
      %s95 = sld [smem:[#allocation3 + %s47]]
      %s96 = sld [smem:[#allocation4 + %s47]]
      %s97 = sld [smem:[#allocation5 + %s47]]
      %s98 = ssub.s32 %s97, 1
      %p99 = scmp.lt.s32.totalorder %s43, %s98
      %s100 = scalar_select %p99, %s43, %s98
      %s101 = sadd.s32 %s96, %s100
      %s102 = ssub.s32 %s88, %s95
      %s103 = ssub.s32 %s94, %s101
      %s104 = sor.u32 %s102, %s103
      %p105 = scmp.eq.s32.totalorder %s104, 0
      %s107 = sadd.s32 %s106, 1
      %s108 = scalar_select %p105, %s106, %s107
      %p111 = pneg %p105
      %p112 = scmp.eq.s32.totalorder %s28, 1
      %p113 = por %p111, %p112
      %p114 = scmp.ne.s32.totalorder %s106, %s109
      %p115 = scmp.eq.s32.totalorder %s28, 0
      %p116 = por %p114, %p115
      %p117 = scmp.ne.s32.totalorder %s106, %s109
      %p118 = scmp.eq.s32.totalorder %s33, 1
      %p119 = por %p117, %p118
      %p120 = scmp.ne.s32.totalorder %s109, %s110
      %p121 = scmp.eq.s32.totalorder %s33, 0
      %p122 = por %p120, %p121
      %p123 = scmp.ne.s32.totalorder %s109, %s110
      %p124 = scmp.eq.s32.totalorder %s34, 1
      %p125 = por %p123, %p124
      %p127 = scmp.ne.s32.totalorder %s110, %s126
      %p128 = scmp.eq.s32.totalorder %s34, 0
      %p129 = por %p127, %p128
      %s130 = ssub.s32 %s35, %s47
      %p131 = scmp.eq.s32.totalorder %s130, 0
      %s133 = sadd.s32 %s132, 1
      %s134 = scalar_select %p131, %s132, %s133
      %p137 = pneg %p131
      %p138 = scmp.eq.s32.totalorder %s28, 1
      %p139 = por %p137, %p138
      %p140 = scmp.ne.s32.totalorder %s132, %s135
      %p141 = scmp.eq.s32.totalorder %s28, 0
      %p142 = por %p140, %p141
      %p143 = scmp.ne.s32.totalorder %s132, %s135
      %p144 = scmp.eq.s32.totalorder %s33, 1
      %p145 = por %p143, %p144
      %p146 = scmp.ne.s32.totalorder %s135, %s136
      %p147 = scmp.eq.s32.totalorder %s33, 0
      %p148 = por %p146, %p147
      %p149 = scmp.ne.s32.totalorder %s135, %s136
      %p150 = scmp.eq.s32.totalorder %s34, 1
      %p151 = por %p149, %p150
      %p153 = scmp.ne.s32.totalorder %s136, %s152
      %p154 = scmp.eq.s32.totalorder %s34, 0
      %p155 = por %p153, %p154
      %p156 = scmp.le.s32.totalorder 1, %s28
      %p157 = scmp.lt.s32.totalorder %s28, 3
      %p158 = pnand %p156, %p157
      %p159 = pneg %p158
      // Predicated region
      $region9: #{_roi_align_pallas.1} parent=5 // pred_check
        _
      $region10: #{_roi_align_pallas.1} parent=5 // pred_check_branch
        %161 = sbr.rel (%p158) target = $region12
      $region11: #{_roi_align_pallas.1} parent=5 // pred_region
        %s162 = ssub.s32 %s28, 1
      $region12: #{_roi_align_pallas.1} parent=5 // pred_fallthru
        _
      %p163 = scmp.lt.s32.totalorder %s28, 2
      // Predicated region
      $region13: #{_roi_align_pallas.1} parent=5 // pred_check
        %p164 = pneg %p163
      $region14: #{_roi_align_pallas.1} parent=5 // pred_check_branch
        %166 = sbr.rel (%p164) target = $region16
      $region15: #{_roi_align_pallas.1} parent=5 // pred_region
        // Predicated region
        $region17: #{_roi_align_pallas.1} parent=15 // pred_check
          %p167 = pneg %p74
        $region18: #{_roi_align_pallas.1} parent=15 // pred_check_branch
          %169 = sbr.rel (%p167) target = $region20
        $region19: #{_roi_align_pallas.1} parent=15 // pred_region
          %s170 = sand.u32 %s64, 1
          %s171 = scalar_lea.sflag [#allocation7], %s170
          %s172 = sand.u32 %s64, 1
          %s173 = smul.addr %s172, 256
          %s174 = scalar_lea.vmem [#allocation6], %s173
          %s175 = sld [smem:[#allocation4 + %s35]]
          %s176 = sld [smem:[#allocation5 + %s35]]
          %s177 = ssub.s32 %s176, 1
          %p178 = scmp.lt.s32.totalorder %s36, %s177
          %s179 = scalar_select %p178, %s36, %s177
          %s180 = sadd.s32 %s175, %s179
          %s181 = smul.u32 32, %s35
          %s182 = smul.u32 2, %s180
          %s184 = ssub.s32 4096, 4096
          %185 = vsyncadd %s171, %s184
          %s186 = smul.addr %s181, 2
          %s187 = sadd.s32 %s182, %s186
          %s188 = smul.addr %s187, 64
          %s189 = scalar_lea.hbm %s3, %s188
          %s190 = sshll.u32 %s174, 4
          %s191 = int_to_ptr.vmem [resolvable:$true] %s190
          %196 = dma.hbm_to_vmem [thread:$0]  %s189, 4096, %s191, %s171, 128, 128, 8
        $region20: #{_roi_align_pallas.1} parent=15 // pred_fallthru
          _
        // Predicated region
        $region21: #{_roi_align_pallas.1} parent=15 // pred_check
          %p197 = pneg %p116
        $region22: #{_roi_align_pallas.1} parent=15 // pred_check_branch
          %199 = sbr.rel (%p197) target = $region24
        $region23: #{_roi_align_pallas.1} parent=15 // pred_region
          %s200 = sld [smem:[#allocation3 + %s35]]
          %s201 = sld [smem:[#allocation4 + %s35]]
          %s202 = sld [smem:[#allocation5 + %s35]]
          %s203 = ssub.s32 %s202, 1
          %p204 = scmp.lt.s32.totalorder %s36, %s203
          %s205 = scalar_select %p204, %s36, %s203
          %s206 = sadd.s32 %s201, %s205
          %s207 = smul.u32 32, %s206
          %p208 = scmp.lt.s32.totalorder %s200, 1
          %s209 = scalar_select %p208, %s200, 1
          %p210 = scmp.lt.s32.totalorder %s207, 31
          %s211 = scalar_select %p210, %s207, 31
          %s212 = smul.addr %s209, 32
          %s213 = sadd.s32 %s211, %s212
          %s214 = smul.addr %s213, 4
          %s215 = scalar_lea.vmem %s4, %s214
          %s216 = sld [smem:[#allocation3 + %s35]]
          %s217 = sld [smem:[#allocation4 + %s35]]
          %s218 = sld [smem:[#allocation5 + %s35]]
          %s219 = ssub.s32 %s218, 1
          %p220 = scmp.lt.s32.totalorder %s36, %s219
          %s221 = scalar_select %p220, %s36, %s219
          %s222 = sadd.s32 %s217, %s221
          %s223 = smul.u32 32, %s222
        $region24: #{_roi_align_pallas.1} parent=15 // pred_fallthru
          _
      $region16: #{_roi_align_pallas.1} parent=5 // pred_fallthru
        _
      %p224 = scmp.le.s32.totalorder 1, %s28
      %p225 = scmp.lt.s32.totalorder %s28, 3
      %p226 = pnand %p224, %p225
      %p227 = pneg %p226
      // Predicated region
      $region25: #{_roi_align_pallas.1} parent=5 // pred_check
        _
      $region26: #{_roi_align_pallas.1} parent=5 // pred_check_branch
        %229 = sbr.rel (%p226) target = $region28
      $region27: #{_roi_align_pallas.1} parent=5 // pred_region
        %s230 = ssub.s32 %s28, 1
        %s231 = sand.u32 %s67, 1
        %s232 = scalar_lea.sflag [#allocation7], %s231
        %s233 = sand.u32 %s67, 1
        %s234 = smul.addr %s233, 256
        %s235 = scalar_lea.vmem [#allocation6], %s234
        // Predicated region
        $region29: #{_roi_align_pallas.1} parent=27 // pred_check
          %p236 = pneg %p80
        $region30: #{_roi_align_pallas.1} parent=27 // pred_check_branch
          %238 = sbr.rel (%p236) target = $region32
        $region31: #{_roi_align_pallas.1} parent=27 // pred_region
          %239 = dma.done %s232, 4096
        $region32: #{_roi_align_pallas.1} parent=27 // pred_fallthru
          _
        %s240 = sand.u32 %s67, 1
        %s241 = scalar_lea.sflag [#allocation7], %s240
        %s242 = sand.u32 %s67, 1
        %s243 = smul.addr %s242, 256
        %s244 = scalar_lea.vmem [#allocation6], %s243
        %p245 = pneg %p80
        %p246 = pneg %p77
        %s247 = sld [smem:[#allocation3 + %s37]]
        %s248 = sld [smem:[#allocation4 + %s37]]
        %s249 = sld [smem:[#allocation5 + %s37]]
        %s250 = ssub.s32 %s249, 1
        %p251 = scmp.lt.s32.totalorder %s38, %s250
        %s252 = scalar_select %p251, %s38, %s250
        %s253 = sadd.s32 %s248, %s252
        %s254 = smul.u32 32, %s253
        %p255 = scmp.lt.s32.totalorder %s247, 1
        %s256 = scalar_select %p255, %s247, 1
        %p257 = scmp.lt.s32.totalorder %s254, 31
        %s258 = scalar_select %p257, %s254, 31
        %s259 = smul.addr %s256, 32
        %s260 = sadd.s32 %s258, %s259
        %s261 = smul.addr %s260, 4
        %s262 = scalar_lea.vmem %s4, %s261
        %p263 = pneg %p122
        %p264 = pneg %p119
        %p265 = pneg %p148
        %p266 = pneg %p145
        %s267 = smul.u32 32, %s37
        %p268 = scmp.lt.s32.totalorder %s267, 63
        %s269 = scalar_select %p268, %s267, 63
        %s270 = smul.addr %s269, 8
        %s271 = scalar_lea.vmem %s5, %s270
        %s272 = sld [smem:[#allocation4 + %s37]]
        %s273 = sld [smem:[#allocation5 + %s37]]
        %s274 = ssub.s32 %s273, 1
        %p275 = scmp.lt.s32.totalorder %s38, %s274
        %s276 = scalar_select %p275, %s38, %s274
        %s277 = sadd.s32 %s272, %s276
        %s278 = smul.u32 32, %s37
        %s279 = smul.u32 2, %s277
        %s280 = sld [smem:[#allocation3 + %s37]]
        %s281 = sld [smem:[#allocation4 + %s37]]
        %s282 = sld [smem:[#allocation5 + %s37]]
        %s283 = ssub.s32 %s282, 1
        %p284 = scmp.lt.s32.totalorder %s38, %s283
        %s285 = scalar_select %p284, %s38, %s283
        %s286 = sadd.s32 %s281, %s285
        %s287 = smul.u32 32, %s286
        %p288 = scmp.lt.s32.totalorder %s280, 1
        %s289 = scalar_select %p288, %s280, 1
        %p290 = scmp.lt.s32.totalorder %s287, 31
        %s291 = scalar_select %p290, %s287, 31
        %s292 = smul.addr %s289, 32
        %s293 = sadd.s32 %s291, %s292
        %s294 = smul.addr %s293, 4
        %s295 = scalar_lea.vmem %s4, %s294
        %s296 = sld [smem:[#allocation3 + %s37]]
        %s297 = sld [smem:[#allocation4 + %s37]]
        %s298 = sld [smem:[#allocation5 + %s37]]
        %s299 = ssub.s32 %s298, 1
        %p300 = scmp.lt.s32.totalorder %s38, %s299
        %s301 = scalar_select %p300, %s38, %s299
        %s302 = sadd.s32 %s297, %s301
        %s303 = smul.u32 32, %s302
        %s304 = smul.u32 32, %s37
        %p305 = scmp.lt.s32.totalorder %s304, 63
        %s306 = scalar_select %p305, %s304, 63
        %s307 = smul.addr %s306, 8
        %s308 = scalar_lea.vmem %s5, %s307
        %s309 = smul.u32 32, %s37
        %v311 = vld [vmem:[%s235] sm:$0xff]
        %v312 = vld [vmem:[%s235 + $0x8] sm:$0xff]
        %v313 = vld [vmem:[%s235 + $0x10] sm:$0xff]
        %v314 = vld [vmem:[%s235 + $0x18] sm:$0xff]
        %v315 = vld [vmem:[%s235 + $0x20] sm:$0xff]
        %v316 = vld [vmem:[%s235 + $0x28] sm:$0xff]
        %v317 = vld [vmem:[%s235 + $0x30] sm:$0xff]
        %v318 = vld [vmem:[%s235 + $0x38] sm:$0xff]
        %v319 = vld [vmem:[%s235 + $0x40] sm:$0xff]
        %v320 = vld [vmem:[%s235 + $0x48] sm:$0xff]
        %v321 = vld [vmem:[%s235 + $0x50] sm:$0xff]
        %v322 = vld [vmem:[%s235 + $0x58] sm:$0xff]
        %v323 = vld [vmem:[%s235 + $0x60] sm:$0xff]
        %v324 = vld [vmem:[%s235 + $0x68] sm:$0xff]
        %v325 = vld [vmem:[%s235 + $0x70] sm:$0xff]
        %v326 = vld [vmem:[%s235 + $0x78] sm:$0xff]
        %v327 = vld [vmem:[%s235 + $0x80] sm:$0xff]
        %v328 = vld [vmem:[%s235 + $0x88] sm:$0xff]
        %v329 = vld [vmem:[%s235 + $0x90] sm:$0xff]
        %v330 = vld [vmem:[%s235 + $0x98] sm:$0xff]
        %v331 = vld [vmem:[%s235 + $0xa0] sm:$0xff]
        %v332 = vld [vmem:[%s235 + $0xa8] sm:$0xff]
        %v333 = vld [vmem:[%s235 + $0xb0] sm:$0xff]
        %v334 = vld [vmem:[%s235 + $0xb8] sm:$0xff]
        %v335 = vld [vmem:[%s235 + $0xc0] sm:$0xff]
        %v336 = vld [vmem:[%s235 + $0xc8] sm:$0xff]
        %v337 = vld [vmem:[%s235 + $0xd0] sm:$0xff]
        %v338 = vld [vmem:[%s235 + $0xd8] sm:$0xff]
        %v339 = vld [vmem:[%s235 + $0xe0] sm:$0xff]
        %v340 = vld [vmem:[%s235 + $0xe8] sm:$0xff]
        %v341 = vld [vmem:[%s235 + $0xf0] sm:$0xff]
        %v342 = vld [vmem:[%s235 + $0xf8] sm:$0xff]
        %v343 = vld [vmem:[%s295] sm:$0xf]
        %v344 = vld [vmem:[%s295 + $0x4] sm:$0xf]
        %v345 = vld [vmem:[%s295 + $0x8] sm:$0xf]
        %v346 = vld [vmem:[%s295 + $0xc] sm:$0xf]
        %v347 = vld [vmem:[%s295 + $0x10] sm:$0xf]
        %v348 = vld [vmem:[%s295 + $0x14] sm:$0xf]
        %v349 = vld [vmem:[%s295 + $0x18] sm:$0xf]
        %v350 = vld [vmem:[%s295 + $0x1c] sm:$0xf]
        %v351 = vld [vmem:[%s295 + $0x20] sm:$0xf]
        %v352 = vld [vmem:[%s295 + $0x24] sm:$0xf]
        %v353 = vld [vmem:[%s295 + $0x28] sm:$0xf]
        %v354 = vld [vmem:[%s295 + $0x2c] sm:$0xf]
        %v355 = vld [vmem:[%s295 + $0x30] sm:$0xf]
        %v356 = vld [vmem:[%s295 + $0x34] sm:$0xf]
        %v357 = vld [vmem:[%s295 + $0x38] sm:$0xf]
        %v358 = vld [vmem:[%s295 + $0x3c] sm:$0xf]
        %v359 = vld [vmem:[%s295 + $0x40] sm:$0xf]
        %v360 = vld [vmem:[%s295 + $0x44] sm:$0xf]
        %v361 = vld [vmem:[%s295 + $0x48] sm:$0xf]
        %v362 = vld [vmem:[%s295 + $0x4c] sm:$0xf]
        %v363 = vld [vmem:[%s295 + $0x50] sm:$0xf]
        %v364 = vld [vmem:[%s295 + $0x54] sm:$0xf]
        %v365 = vld [vmem:[%s295 + $0x58] sm:$0xf]
        %v366 = vld [vmem:[%s295 + $0x5c] sm:$0xf]
        %v367 = vld [vmem:[%s295 + $0x60] sm:$0xf]
        %v368 = vld [vmem:[%s295 + $0x64] sm:$0xf]
        %v369 = vld [vmem:[%s295 + $0x68] sm:$0xf]
        %v370 = vld [vmem:[%s295 + $0x6c] sm:$0xf]
        %v371 = vld [vmem:[%s295 + $0x70] sm:$0xf]
        %v372 = vld [vmem:[%s295 + $0x74] sm:$0xf]
        %v373 = vld [vmem:[%s295 + $0x78] sm:$0xf]
        %v374 = vld [vmem:[%s295 + $0x7c] sm:$0xf]
        %v407 = vunpack.c.l.b16 %v311
        %v408 = vunpack.c.h.b16 %v311
        %v409 = vunpack.c.l.b16 %v312
        %v410 = vunpack.c.h.b16 %v312
        %v411 = vunpack.c.l.b16 %v313
        %v412 = vunpack.c.h.b16 %v313
        %v413 = vunpack.c.l.b16 %v314
        %v414 = vunpack.c.h.b16 %v314
        %v415 = vunpack.c.l.b16 %v315
        %v416 = vunpack.c.h.b16 %v315
        %v417 = vunpack.c.l.b16 %v316
        %v418 = vunpack.c.h.b16 %v316
        %v419 = vunpack.c.l.b16 %v317
        %v420 = vunpack.c.h.b16 %v317
        %v421 = vunpack.c.l.b16 %v318
        %v422 = vunpack.c.h.b16 %v318
        %v423 = vunpack.c.l.b16 %v319
        %v424 = vunpack.c.h.b16 %v319
        %v425 = vunpack.c.l.b16 %v320
        %v426 = vunpack.c.h.b16 %v320
        %v427 = vunpack.c.l.b16 %v321
        %v428 = vunpack.c.h.b16 %v321
        %v429 = vunpack.c.l.b16 %v322
        %v430 = vunpack.c.h.b16 %v322
        %v431 = vunpack.c.l.b16 %v323
        %v432 = vunpack.c.h.b16 %v323
        %v433 = vunpack.c.l.b16 %v324
        %v434 = vunpack.c.h.b16 %v324
        %v435 = vunpack.c.l.b16 %v325
        %v436 = vunpack.c.h.b16 %v325
        %v437 = vunpack.c.l.b16 %v326
        %v438 = vunpack.c.h.b16 %v326
        %v439 = vunpack.c.l.b16 %v327
        %v440 = vunpack.c.h.b16 %v327
        %v441 = vunpack.c.l.b16 %v328
        %v442 = vunpack.c.h.b16 %v328
        %v443 = vunpack.c.l.b16 %v329
        %v444 = vunpack.c.h.b16 %v329
        %v445 = vunpack.c.l.b16 %v330
        %v446 = vunpack.c.h.b16 %v330
        %v447 = vunpack.c.l.b16 %v331
        %v448 = vunpack.c.h.b16 %v331
        %v449 = vunpack.c.l.b16 %v332
        %v450 = vunpack.c.h.b16 %v332
        %v451 = vunpack.c.l.b16 %v333
        %v452 = vunpack.c.h.b16 %v333
        %v453 = vunpack.c.l.b16 %v334
        %v454 = vunpack.c.h.b16 %v334
        %v455 = vunpack.c.l.b16 %v335
        %v456 = vunpack.c.h.b16 %v335
        %v457 = vunpack.c.l.b16 %v336
        %v458 = vunpack.c.h.b16 %v336
        %v459 = vunpack.c.l.b16 %v337
        %v460 = vunpack.c.h.b16 %v337
        %v461 = vunpack.c.l.b16 %v338
        %v462 = vunpack.c.h.b16 %v338
        %v463 = vunpack.c.l.b16 %v339
        %v464 = vunpack.c.h.b16 %v339
        %v465 = vunpack.c.l.b16 %v340
        %v466 = vunpack.c.h.b16 %v340
        %v467 = vunpack.c.l.b16 %v341
        %v468 = vunpack.c.h.b16 %v341
        %v469 = vunpack.c.l.b16 %v342
        %v470 = vunpack.c.h.b16 %v342
        %v471 = vpack.c.b16 %v409, %v407
        %v472 = vpack.c.b16 %v410, %v408
        %v473 = vpack.c.b16 %v413, %v411
        %v474 = vpack.c.b16 %v414, %v412
        %v475 = vpack.c.b16 %v417, %v415
        %v476 = vpack.c.b16 %v418, %v416
        %v477 = vpack.c.b16 %v421, %v419
        %v478 = vpack.c.b16 %v422, %v420
        %v479 = vpack.c.b16 %v425, %v423
        %v480 = vpack.c.b16 %v426, %v424
        %v481 = vpack.c.b16 %v429, %v427
        %v482 = vpack.c.b16 %v430, %v428
        %v483 = vpack.c.b16 %v433, %v431
        %v484 = vpack.c.b16 %v434, %v432
        %v485 = vpack.c.b16 %v437, %v435
        %v486 = vpack.c.b16 %v438, %v436
        %v487 = vpack.c.b16 %v441, %v439
        %v488 = vpack.c.b16 %v442, %v440
        %v489 = vpack.c.b16 %v445, %v443
        %v490 = vpack.c.b16 %v446, %v444
        %v491 = vpack.c.b16 %v449, %v447
        %v492 = vpack.c.b16 %v450, %v448
        %v493 = vpack.c.b16 %v453, %v451
        %v494 = vpack.c.b16 %v454, %v452
        %v495 = vpack.c.b16 %v457, %v455
        %v496 = vpack.c.b16 %v458, %v456
        %v497 = vpack.c.b16 %v461, %v459
        %v498 = vpack.c.b16 %v462, %v460
        %v499 = vpack.c.b16 %v465, %v463
        %v500 = vpack.c.b16 %v466, %v464
        %v501 = vpack.c.b16 %v469, %v467
        %v502 = vpack.c.b16 %v470, %v468
        %v567 = vunpack.c.l.b16 %v343
        %v568 = vunpack.c.l.b16 %v344
        %v569 = vunpack.c.l.b16 %v345
        %v570 = vunpack.c.l.b16 %v346
        %v571 = vunpack.c.l.b16 %v347
        %v572 = vunpack.c.l.b16 %v348
        %v573 = vunpack.c.l.b16 %v349
        %v574 = vunpack.c.l.b16 %v350
        %v575 = vunpack.c.l.b16 %v351
        %v576 = vunpack.c.l.b16 %v352
        %v577 = vunpack.c.l.b16 %v353
        %v578 = vunpack.c.l.b16 %v354
        %v579 = vunpack.c.l.b16 %v355
        %v580 = vunpack.c.l.b16 %v356
        %v581 = vunpack.c.l.b16 %v357
        %v582 = vunpack.c.l.b16 %v358
        %v583 = vunpack.c.l.b16 %v359
        %v584 = vunpack.c.l.b16 %v360
        %v585 = vunpack.c.l.b16 %v361
        %v586 = vunpack.c.l.b16 %v362
        %v587 = vunpack.c.l.b16 %v363
        %v588 = vunpack.c.l.b16 %v364
        %v589 = vunpack.c.l.b16 %v365
        %v590 = vunpack.c.l.b16 %v366
        %v591 = vunpack.c.l.b16 %v367
        %v592 = vunpack.c.l.b16 %v368
        %v593 = vunpack.c.l.b16 %v369
        %v594 = vunpack.c.l.b16 %v370
        %v595 = vunpack.c.l.b16 %v371
        %v596 = vunpack.c.l.b16 %v372
        %v597 = vunpack.c.l.b16 %v373
        %v598 = vunpack.c.l.b16 %v374
        %v599 = vpack.c.b16 %v568, %v567
        %v600 = vpack.c.b16 %v570, %v569
        %v601 = vpack.c.b16 %v572, %v571
        %v602 = vpack.c.b16 %v574, %v573
        %v603 = vpack.c.b16 %v576, %v575
        %v604 = vpack.c.b16 %v578, %v577
        %v605 = vpack.c.b16 %v580, %v579
        %v606 = vpack.c.b16 %v582, %v581
        %v607 = vpack.c.b16 %v584, %v583
        %v608 = vpack.c.b16 %v586, %v585
        %v609 = vpack.c.b16 %v588, %v587
        %v610 = vpack.c.b16 %v590, %v589
        %v611 = vpack.c.b16 %v592, %v591
        %v612 = vpack.c.b16 %v594, %v593
        %v613 = vpack.c.b16 %v596, %v595
        %v614 = vpack.c.b16 %v598, %v597
        %631 = vmatprep.subr.bf16.mxu0 0
        %632 = vmatpush1.bf16.msra.mxu0 %v599
        %633 = vmatprep.subr.bf16.mxu0 0
        %634 = vmatpush1.bf16.msra.mxu0 %v600
        %635 = vmatprep.subr.bf16.mxu0 0
        %636 = vmatpush1.bf16.msra.mxu0 %v601
        %637 = vmatprep.subr.bf16.mxu0 0
        %638 = vmatpush1.bf16.msra.mxu0 %v602
        %639 = vmatprep.subr.bf16.mxu0 0
        %640 = vmatpush1.bf16.msra.mxu0 %v603
        %641 = vmatprep.subr.bf16.mxu0 0
        %642 = vmatpush1.bf16.msra.mxu0 %v604
        %643 = vmatprep.subr.bf16.mxu0 0
        %644 = vmatpush1.bf16.msra.mxu0 %v605
        %645 = vmatprep.subr.bf16.mxu0 0
        %646 = vmatpush1.bf16.msra.mxu0 %v606
        %647 = vmatprep.subr.bf16.mxu0 0
        %648 = vmatpush1.bf16.msra.mxu0 %v607
        %649 = vmatprep.subr.bf16.mxu0 0
        %650 = vmatpush1.bf16.msra.mxu0 %v608
        %651 = vmatprep.subr.bf16.mxu0 0
        %652 = vmatpush1.bf16.msra.mxu0 %v609
        %653 = vmatprep.subr.bf16.mxu0 0
        %654 = vmatpush1.bf16.msra.mxu0 %v610
        %655 = vmatprep.subr.bf16.mxu0 0
        %656 = vmatpush1.bf16.msra.mxu0 %v611
        %657 = vmatprep.subr.bf16.mxu0 0
        %658 = vmatpush1.bf16.msra.mxu0 %v612
        %659 = vmatprep.subr.bf16.mxu0 0
        %660 = vmatpush1.bf16.msra.mxu0 %v613
        %661 = vmatprep.subr.bf16.mxu0 0
        %662 = vmatpush1.bf16.msra.mxu0 %v614
        %663 = vmatprep.mubr.bf16.mxu0 %v472
        %664 = vmatmul.mubr.bf16.gmra.mrb[0].mxu0 %v471
        %v665 = vpop.f32.mrb[0].mxu0
        %v666 = vadd.f32 0.0, %v665
        %v667 = vpop.f32.mrb[0].mxu0
        %v668 = vpop.f32.mrb[0].mxu0
        %v669 = vadd.f32 0.0, %v668
        %v670 = vpop.f32.mrb[0].mxu0
        %671 = vmatprep.mubr.bf16.mxu0 %v474
        %672 = vmatmul.mubr.bf16.gmra.mrb[0].mxu0 %v473
        %v673 = vpop.f32.mrb[0].mxu0
        %v674 = vadd.f32 0.0, %v673
        %v675 = vpop.f32.mrb[0].mxu0
        %v676 = vpop.f32.mrb[0].mxu0
        %v677 = vadd.f32 0.0, %v676
        %v678 = vpop.f32.mrb[0].mxu0
        %679 = vmatprep.mubr.bf16.mxu0 %v476
        %680 = vmatmul.mubr.bf16.gmra.mrb[0].mxu0 %v475
        %v681 = vpop.f32.mrb[0].mxu0
        %v682 = vadd.f32 0.0, %v681
        %v683 = vpop.f32.mrb[0].mxu0
        %v684 = vpop.f32.mrb[0].mxu0
        %v685 = vadd.f32 0.0, %v684
        %v686 = vpop.f32.mrb[0].mxu0
        %687 = vmatprep.mubr.bf16.mxu0 %v478
        %688 = vmatmul.mubr.bf16.gmra.mrb[0].mxu0 %v477
        %v689 = vpop.f32.mrb[0].mxu0
        %v690 = vadd.f32 0.0, %v689
        %v691 = vpop.f32.mrb[0].mxu0
        %v692 = vpop.f32.mrb[0].mxu0
        %v693 = vadd.f32 0.0, %v692
        %v694 = vpop.f32.mrb[0].mxu0
        %695 = vmatprep.mubr.bf16.mxu0 %v480
        %696 = vmatmul.mubr.bf16.gmra.mrb[0].mxu0 %v479
        %v697 = vpop.f32.mrb[0].mxu0
        %v698 = vadd.f32 0.0, %v697
        %v699 = vpop.f32.mrb[0].mxu0
        %v700 = vpop.f32.mrb[0].mxu0
        %v701 = vadd.f32 0.0, %v700
        %v702 = vpop.f32.mrb[0].mxu0
        %703 = vmatprep.mubr.bf16.mxu0 %v482
        %704 = vmatmul.mubr.bf16.gmra.mrb[0].mxu0 %v481
        %v705 = vpop.f32.mrb[0].mxu0
        %v706 = vadd.f32 0.0, %v705
        %v707 = vpop.f32.mrb[0].mxu0
        %v708 = vpop.f32.mrb[0].mxu0
        %v709 = vadd.f32 0.0, %v708
        %v710 = vpop.f32.mrb[0].mxu0
        %711 = vmatprep.mubr.bf16.mxu0 %v484
        %712 = vmatmul.mubr.bf16.gmra.mrb[0].mxu0 %v483
        %v713 = vpop.f32.mrb[0].mxu0
        %v714 = vadd.f32 0.0, %v713
        %v715 = vpop.f32.mrb[0].mxu0
        %v716 = vpop.f32.mrb[0].mxu0
        %v717 = vadd.f32 0.0, %v716
        %v718 = vpop.f32.mrb[0].mxu0
        %719 = vmatprep.mubr.bf16.mxu0 %v486
        %720 = vmatmul.mubr.bf16.gmra.mrb[0].mxu0 %v485
        %v721 = vpop.f32.mrb[0].mxu0
        %v722 = vadd.f32 0.0, %v721
        %v723 = vpop.f32.mrb[0].mxu0
        %v724 = vpop.f32.mrb[0].mxu0
        %v725 = vadd.f32 0.0, %v724
        %v726 = vpop.f32.mrb[0].mxu0
        %727 = vmatprep.mubr.bf16.mxu0 %v488
        %728 = vmatmul.mubr.bf16.gmra.mrb[0].mxu0 %v487
        %v729 = vpop.f32.mrb[0].mxu0
        %v730 = vadd.f32 0.0, %v729
        %v731 = vpop.f32.mrb[0].mxu0
        %v732 = vpop.f32.mrb[0].mxu0
        %v733 = vadd.f32 0.0, %v732
        %v734 = vpop.f32.mrb[0].mxu0
        %735 = vmatprep.mubr.bf16.mxu0 %v490
        %736 = vmatmul.mubr.bf16.gmra.mrb[0].mxu0 %v489
        %v737 = vpop.f32.mrb[0].mxu0
        %v738 = vadd.f32 0.0, %v737
        %v739 = vpop.f32.mrb[0].mxu0
        %v740 = vpop.f32.mrb[0].mxu0
        %v741 = vadd.f32 0.0, %v740
        %v742 = vpop.f32.mrb[0].mxu0
        %743 = vmatprep.mubr.bf16.mxu0 %v492
        %744 = vmatmul.mubr.bf16.gmra.mrb[0].mxu0 %v491
        %v745 = vpop.f32.mrb[0].mxu0
        %v746 = vadd.f32 0.0, %v745
        %v747 = vpop.f32.mrb[0].mxu0
        %v748 = vpop.f32.mrb[0].mxu0
        %v749 = vadd.f32 0.0, %v748
        %v750 = vpop.f32.mrb[0].mxu0
        %751 = vmatprep.mubr.bf16.mxu0 %v494
        %752 = vmatmul.mubr.bf16.gmra.mrb[0].mxu0 %v493
        %v753 = vpop.f32.mrb[0].mxu0
        %v754 = vadd.f32 0.0, %v753
        %v755 = vpop.f32.mrb[0].mxu0
        %v756 = vpop.f32.mrb[0].mxu0
        %v757 = vadd.f32 0.0, %v756
        %v758 = vpop.f32.mrb[0].mxu0
        %759 = vmatprep.mubr.bf16.mxu0 %v496
        %760 = vmatmul.mubr.bf16.gmra.mrb[0].mxu0 %v495
        %v761 = vpop.f32.mrb[0].mxu0
        %v762 = vadd.f32 0.0, %v761
        %v763 = vpop.f32.mrb[0].mxu0
        %v764 = vpop.f32.mrb[0].mxu0
        %v765 = vadd.f32 0.0, %v764
        %v766 = vpop.f32.mrb[0].mxu0
        %767 = vmatprep.mubr.bf16.mxu0 %v498
        %768 = vmatmul.mubr.bf16.gmra.mrb[0].mxu0 %v497
        %v769 = vpop.f32.mrb[0].mxu0
        %v770 = vadd.f32 0.0, %v769
        %v771 = vpop.f32.mrb[0].mxu0
        %v772 = vpop.f32.mrb[0].mxu0
        %v773 = vadd.f32 0.0, %v772
        %v774 = vpop.f32.mrb[0].mxu0
        %775 = vmatprep.mubr.bf16.mxu0 %v500
        %776 = vmatmul.mubr.bf16.gmra.mrb[0].mxu0 %v499
        %v777 = vpop.f32.mrb[0].mxu0
        %v778 = vadd.f32 0.0, %v777
        %v779 = vpop.f32.mrb[0].mxu0
        %v780 = vpop.f32.mrb[0].mxu0
        %v781 = vadd.f32 0.0, %v780
        %v782 = vpop.f32.mrb[0].mxu0
        %783 = vmatprep.mubr.bf16.mxu0 %v502
        %784 = vmatmul.mubr.bf16.gmra.mrb[0].mxu0 %v501
        %v785 = vpop.f32.mrb[0].mxu0
        %v786 = vadd.f32 0.0, %v785
        %v787 = vpop.f32.mrb[0].mxu0
        %v788 = vpop.f32.mrb[0].mxu0
        %v789 = vadd.f32 0.0, %v788
        %v790 = vpop.f32.mrb[0].mxu0
        %791 = vdwg.mxu0
        %vm792 = vcmask 31744
        %793 = vst.msk [vmem:[%s308] sm:$0xff] %vm792, %v666
        %794 = vst.msk [vmem:[%s308 + $0x8] sm:$0xff] %vm792, %v669
        %795 = vst.msk [vmem:[%s308 + $0x10] sm:$0xff] %vm792, %v674
        %796 = vst.msk [vmem:[%s308 + $0x18] sm:$0xff] %vm792, %v677
        %797 = vst.msk [vmem:[%s308 + $0x20] sm:$0xff] %vm792, %v682
        %798 = vst.msk [vmem:[%s308 + $0x28] sm:$0xff] %vm792, %v685
        %799 = vst.msk [vmem:[%s308 + $0x30] sm:$0xff] %vm792, %v690
        %800 = vst.msk [vmem:[%s308 + $0x38] sm:$0xff] %vm792, %v693
        %801 = vst.msk [vmem:[%s308 + $0x40] sm:$0xff] %vm792, %v698
        %802 = vst.msk [vmem:[%s308 + $0x48] sm:$0xff] %vm792, %v701
        %803 = vst.msk [vmem:[%s308 + $0x50] sm:$0xff] %vm792, %v706
        %804 = vst.msk [vmem:[%s308 + $0x58] sm:$0xff] %vm792, %v709
        %805 = vst.msk [vmem:[%s308 + $0x60] sm:$0xff] %vm792, %v714
        %806 = vst.msk [vmem:[%s308 + $0x68] sm:$0xff] %vm792, %v717
        %807 = vst.msk [vmem:[%s308 + $0x70] sm:$0xff] %vm792, %v722
        %808 = vst.msk [vmem:[%s308 + $0x78] sm:$0xff] %vm792, %v725
        %809 = vst.msk [vmem:[%s308 + $0x80] sm:$0xff] %vm792, %v730
        %810 = vst.msk [vmem:[%s308 + $0x88] sm:$0xff] %vm792, %v733
        %811 = vst.msk [vmem:[%s308 + $0x90] sm:$0xff] %vm792, %v738
        %812 = vst.msk [vmem:[%s308 + $0x98] sm:$0xff] %vm792, %v741
        %813 = vst.msk [vmem:[%s308 + $0xa0] sm:$0xff] %vm792, %v746
        %814 = vst.msk [vmem:[%s308 + $0xa8] sm:$0xff] %vm792, %v749
        %815 = vst.msk [vmem:[%s308 + $0xb0] sm:$0xff] %vm792, %v754
        %816 = vst.msk [vmem:[%s308 + $0xb8] sm:$0xff] %vm792, %v757
        %817 = vst.msk [vmem:[%s308 + $0xc0] sm:$0xff] %vm792, %v762
        %818 = vst.msk [vmem:[%s308 + $0xc8] sm:$0xff] %vm792, %v765
        %819 = vst.msk [vmem:[%s308 + $0xd0] sm:$0xff] %vm792, %v770
        %820 = vst.msk [vmem:[%s308 + $0xd8] sm:$0xff] %vm792, %v773
        %821 = vst.msk [vmem:[%s308 + $0xe0] sm:$0xff] %vm792, %v778
        %822 = vst.msk [vmem:[%s308 + $0xe8] sm:$0xff] %vm792, %v781
        %823 = vst.msk [vmem:[%s308 + $0xf0] sm:$0xff] %vm792, %v786
        %824 = vst.msk [vmem:[%s308 + $0xf8] sm:$0xff] %vm792, %v789
        %s825 = smul.u32 32, %s37
        %p826 = scmp.lt.s32.totalorder %s825, 63
        %s827 = scalar_select %p826, %s825, 63
        %s828 = smul.addr %s827, 8
        %s829 = scalar_lea.vmem %s5, %s828
        // Predicated region
        $region33: #{_roi_align_pallas.1} parent=27 // pred_check
          %p830 = pneg %p145
        $region34: #{_roi_align_pallas.1} parent=27 // pred_check_branch
          %832 = sbr.rel (%p830) target = $region36
        $region35: #{_roi_align_pallas.1} parent=27 // pred_region
          %s833 = smul.u32 32, %s37
        $region36: #{_roi_align_pallas.1} parent=27 // pred_fallthru
          _
      $region28: #{_roi_align_pallas.1} parent=5 // pred_fallthru
        _
      %p834 = scmp.le.s32.totalorder 2, %s28
      // Predicated region
      $region37: #{_roi_align_pallas.1} parent=5 // pred_check
        %p835 = pneg %p834
      $region38: #{_roi_align_pallas.1} parent=5 // pred_check_branch
        %837 = sbr.rel (%p835) target = $region40
      $region39: #{_roi_align_pallas.1} parent=5 // pred_region
        %s838 = ssub.s32 %s28, 2
        // Predicated region
        $region41: #{_roi_align_pallas.1} parent=39 // pred_check
          %p839 = pneg %p151
        $region42: #{_roi_align_pallas.1} parent=39 // pred_check_branch
          %841 = sbr.rel (%p839) target = $region44
        $region43: #{_roi_align_pallas.1} parent=39 // pred_region
          %s842 = smul.u32 32, %s39
          %p843 = scmp.lt.s32.totalorder %s842, 63
          %s844 = scalar_select %p843, %s842, 63
          %s845 = smul.addr %s844, 8
          %s846 = scalar_lea.vmem %s5, %s845
        $region44: #{_roi_align_pallas.1} parent=39 // pred_fallthru
          _
      $region40: #{_roi_align_pallas.1} parent=5 // pred_fallthru
        _
    $region6: #{_roi_align_pallas.1} parent=1 // loop_footer
      %s32 = sadd.s32 1, %s28
    $region7: #{_roi_align_pallas.1} parent=1 // loop_footer_branch
      %27 = sbr.rel target = $region3
    $region8: #{_roi_align_pallas.1} parent=1 // loop_exit
      _
    %847 = vsyncpa [#allocation7], 1
    %s848 = scalar_lea.sflag [#allocation7], 1
    %849 = vsyncpa %s848, 1

</llo_original>
